<compile_context>
chip_gen: v7x
topology: tpu7x:2x2x1
jax: 0.10.0
libtpu: 0.0.40
codegen_flags: <defaults>
</compile_context>

<pallas_src>
import functools

import jax
import jax.numpy as jnp
from jax import lax
from jax.experimental import pallas as pl
from jax.experimental.pallas import tpu as pltpu


_EPS2 = 1e-18  # eps = 1e-9, squared


def _finalize(dot, sd, sr, out_dtype):
    # max(||a||,eps)*max(||b||,eps) == sqrt(max(sd,eps^2)*max(sr,eps^2));
    # fold the two sqrts + divide into a single EUP rsqrt.
    denom = jnp.maximum(sd, jnp.float32(_EPS2)) * jnp.maximum(sr, jnp.float32(_EPS2))
    return (dot * lax.rsqrt(denom)).astype(out_dtype)


def _cosine_sim_kernel_single(xd_ref, xr_ref, o_ref):
    """Whole spatial dim in one block: single pass, no scratch accumulators."""
    xd = xd_ref[...].astype(jnp.float32)
    xr = xr_ref[...].astype(jnp.float32)
    dot = jnp.sum(xd * xr, axis=-1, keepdims=True)
    sd = jnp.sum(xd * xd, axis=-1, keepdims=True)
    sr = jnp.sum(xr * xr, axis=-1, keepdims=True)
    o_ref[...] = _finalize(dot, sd, sr, o_ref.dtype)


def _cosine_sim_kernel_split(xd_ref, xr_ref, o_ref, dot_acc, sd_acc, sr_acc,
                             *, tile_l, valid_l, mask_lanes):
    """Spatial dim streamed over the 'arbitrary' k axis with f32 accumulators."""
    k = pl.program_id(1)

    @pl.when(k == 0)
    def _():
        dot_acc[...] = jnp.zeros_like(dot_acc)
        sd_acc[...] = jnp.zeros_like(sd_acc)
        sr_acc[...] = jnp.zeros_like(sr_acc)

    xd = xd_ref[...].astype(jnp.float32)
    xr = xr_ref[...].astype(jnp.float32)

    if mask_lanes:  # static flag: last L block is partial -> zero invalid lanes
        lane = lax.broadcasted_iota(jnp.int32, xd.shape, xd.ndim - 1)
        valid = (k * tile_l + lane) < valid_l
        xd = jnp.where(valid, xd, 0.0)
        xr = jnp.where(valid, xr, 0.0)

    dot_acc[...] += jnp.sum(xd * xr, axis=-1, keepdims=True)
    sd_acc[...] += jnp.sum(xd * xd, axis=-1, keepdims=True)
    sr_acc[...] += jnp.sum(xr * xr, axis=-1, keepdims=True)

    @pl.when(k == pl.num_programs(1) - 1)
    def _():
        o_ref[...] = _finalize(dot_acc[...], sd_acc[...], sr_acc[...], o_ref.dtype)


def _tpu_hw_info():
    """(vmem_capacity_bytes, multi_tensorcore) with conservative fallbacks."""
    vmem = 64 << 20       # v7x per-TC VMEM is the safe lower bound
    multi_tc = False
    try:
        info = pltpu.get_tpu_info()
        vmem = int(getattr(info, "vmem_capacity_bytes", vmem))
        for attr in ("num_cores", "tensorcores_per_chip", "num_tensorcores"):
            n = getattr(info, attr, None)
            if n is not None:
                multi_tc = int(n) > 1
                break
    except Exception:
        pass  # interpret mode / unknown chip: keep conservative defaults
    return vmem, multi_tc


def _round_up(x, m):
    return -(-x // m) * m


def _pick_tiles(rows, L, itemsize, vmem_capacity, multi_tc):
    """Pick (tile_rows, tile_l) using a bytes-per-step target and a VMEM budget
    that includes the in-kernel f32 upcasts/products, not just input buffers."""
    sub = {4: 8, 2: 16, 1: 32}.get(itemsize, 8)   # sublane packing per dtype
    lane = 128

    # Per-element VMEM bytes: 2 inputs x 2 pipeline buffers in native dtype
    # plus ~4 f32-width in-kernel temporaries (xd/xr upcasts + live products).
    per_elem = 4 * itemsize + 16

    big_vmem = vmem_capacity >= (100 << 20)          # v5e/v6e (128 MiB VMEM)
    budget = (40 << 20) if big_vmem else (20 << 20)  # keep v7x (64 MiB) lean
    target_step_bytes = 16 << 20                     # streamed HBM bytes / step

    max_elems = max(budget // per_elem, sub * lane)

    # ---- L (lane) tile: keep the whole spatial dim in one block unless that
    # would starve the row tile; otherwise split into multiples of 128 lanes.
    min_rows = min(max(sub, _round_up(rows, sub)), 256)
    if L <= lane or (max_elems // L) >= min_rows:
        tile_l = L
    else:
        tile_l = max(lane, ((max_elems // min_rows) // lane) * lane)
        if tile_l >= L:
            tile_l = L

    # ---- Row (sublane) tile: just big enough to hit the per-step byte target,
    # bounded by the VMEM budget and the array extent.
    budget_rows = max(sub, ((max_elems // tile_l) // sub) * sub)
    target_rows = _round_up(
        max(target_step_bytes // max(2 * tile_l * itemsize, 1), 1), sub)
    tile_rows = max(sub, min(budget_rows, target_rows))
    if rows <= sub:
        tile_rows = rows                 # block equals full row dim -> tiling OK
    else:
        tile_rows = min(tile_rows, (rows // sub) * sub)
        # Multi-TensorCore chips (v7x): keep >=2 steps on the 'parallel' row
        # axis so the grid can shard across both cores.  On single-TC v5e/v6e
        # the grid is a serial loop, so keep the largest tile instead.
        if multi_tc and rows >= 2 * sub:
            half = _round_up((rows + 1) // 2, sub)
            tile_rows = max(sub, min(tile_rows, half))

    return int(tile_rows), int(tile_l)


def get_sim(x_dis, x_ref, _tile_override=None):
    """Pallas implementation of GetSim.forward.

    x_dis, x_ref: (N, C, H, W) arrays of identical shape/dtype.
    Returns: (N, C) cosine similarity over the flattened spatial dim.
    """
    assert x_dis.shape == x_ref.shape
    N, C, H, W = x_dis.shape
    rows = N * C
    L = H * W
    itemsize = jnp.dtype(x_dis.dtype).itemsize

    # Free (contiguous) reshapes; keep native dtype to stream minimal HBM bytes.
    xd2 = x_dis.reshape(rows, L)
    xr2 = x_ref.reshape(rows, L)

    vmem_capacity, multi_tc = _tpu_hw_info()
    if _tile_override is None:
        tile_rows, tile_l = _pick_tiles(rows, L, itemsize, vmem_capacity, multi_tc)
    else:
        tile_rows, tile_l = _tile_override

    num_row_tiles = pl.cdiv(rows, tile_rows)  # partial last block, no jnp.pad copy
    num_l_tiles = pl.cdiv(L, tile_l)
    mask_lanes = (L % tile_l) != 0

    # VMEM limit sized for the double-buffered input tiles + f32 temporaries
    # + accumulator scratch (+ headroom), clamped per generation.
    per_elem = 4 * itemsize + 16
    working_set = tile_rows * tile_l * per_elem + 3 * tile_rows * 128 * 4
    limit_cap = (100 << 20) if vmem_capacity >= (100 << 20) else (56 << 20)
    limit_cap = min(limit_cap, max(vmem_capacity - (8 << 20), 32 << 20))
    vmem_limit = int(min(max(working_set + (16 << 20), 32 << 20), limit_cap))

    out_shape = jax.ShapeDtypeStruct((rows, 1), jnp.float32)

    if num_l_tiles == 1:
        out = pl.pallas_call(
            _cosine_sim_kernel_single,
            out_shape=out_shape,
            grid_spec=pltpu.PrefetchScalarGridSpec(
                num_scalar_prefetch=0,
                grid=(num_row_tiles,),
                in_specs=[
                    pl.BlockSpec((tile_rows, L), lambda i: (i, 0)),
                    pl.BlockSpec((tile_rows, L), lambda i: (i, 0)),
                ],
                out_specs=pl.BlockSpec((tile_rows, 1), lambda i: (i, 0)),
            ),
            compiler_params=pltpu.CompilerParams(
                dimension_semantics=("parallel",),
                vmem_limit_bytes=vmem_limit),
        )(xd2, xr2)
    else:
        kernel = functools.partial(
            _cosine_sim_kernel_split,
            tile_l=tile_l, valid_l=L, mask_lanes=mask_lanes)
        out = pl.pallas_call(
            kernel,
            out_shape=out_shape,
            grid_spec=pltpu.PrefetchScalarGridSpec(
                num_scalar_prefetch=0,
                grid=(num_row_tiles, num_l_tiles),
                in_specs=[
                    pl.BlockSpec((tile_rows, tile_l), lambda i, k: (i, k)),
                    pl.BlockSpec((tile_rows, tile_l), lambda i, k: (i, k)),
                ],
                out_specs=pl.BlockSpec((tile_rows, 1), lambda i, k: (i, 0)),
                scratch_shapes=[pltpu.VMEM((tile_rows, 1), jnp.float32)] * 3,
            ),
            compiler_params=pltpu.CompilerParams(
                dimension_semantics=("parallel", "arbitrary"),
                vmem_limit_bytes=vmem_limit),
        )(xd2, xr2)

    # Match torch.cosine_similarity dtype (returns input dtype).
    return out[:, 0].reshape(N, C).astype(x_dis.dtype)


def _ref_get_sim(x_dis, x_ref):
    N, C, H, W = x_dis.shape
    a = x_dis.reshape(N, C, H * W).astype(jnp.float32)
    b = x_ref.reshape(N, C, H * W).astype(jnp.float32)
    dot = jnp.sum(a * b, axis=2)
    na = jnp.maximum(jnp.sqrt(jnp.sum(a * a, axis=2)), 1e-9)
    nb = jnp.maximum(jnp.sqrt(jnp.sum(b * b, axis=2)), 1e-9)
    return dot / (na * nb)


if __name__ == "__main__":
    key = jax.random.PRNGKey(0)
    k1, k2, k3, k4 = jax.random.split(key, 4)

    # 1) Default path (single L block, scratch-free kernel).
    N, C, H, W = 2, 4, 16, 16
    x_dis = jax.random.normal(k1, (N, C, H, W), dtype=jnp.float32)
    x_ref = jax.random.normal(k2, (N, C, H, W), dtype=jnp.float32)
    out = jax.block_until_ready(get_sim(x_dis, x_ref))
    ref = _ref_get_sim(x_dis, x_ref)
    assert out.shape == (N, C)
    assert jnp.max(jnp.abs(out.astype(jnp.float32) - ref)) < 1e-5

    # 2) Split-L path with a partial (masked) last lane block: force 128-lane tiles.
    N2, C2, H2, W2 = 2, 3, 16, 20            # L = 320 -> tiles 128/128/64(partial)
    y_dis = jax.random.normal(k3, (N2, C2, H2, W2), dtype=jnp.float32)
    y_ref = jax.random.normal(k4, (N2, C2, H2, W2), dtype=jnp.float32)
    out2 = jax.block_until_ready(
        get_sim(y_dis, y_ref, _tile_override=(N2 * C2, 128)))
    ref2 = _ref_get_sim(y_dis, y_ref)
    assert out2.shape == (N2, C2)
    assert jnp.max(jnp.abs(out2.astype(jnp.float32) - ref2)) < 1e-5

    # 3) bf16 inputs (native-dtype streaming, f32 accumulation in-kernel).
    xb_dis = jax.random.normal(k1, (2, 8, 16, 16), dtype=jnp.float32).astype(jnp.bfloat16)
    xb_ref = jax.random.normal(k2, (2, 8, 16, 16), dtype=jnp.float32).astype(jnp.bfloat16)
    out3 = jax.block_until_ready(get_sim(xb_dis, xb_ref))
    ref3 = _ref_get_sim(xb_dis.astype(jnp.float32), xb_ref.astype(jnp.float32))
    assert out3.shape == (2, 8) and out3.dtype == jnp.bfloat16
    assert jnp.max(jnp.abs(out3.astype(jnp.float32) - ref3)) < 2e-2

    print("KERNEL_OK")
</pallas_src>

<mosaic_0001>
module attributes {stable_mosaic.version = 11 : i64} {
  func.func @_cosine_sim_kernel_single(%arg0: i32, %arg1: memref<8x256xf32, #tpu.memory_space<vmem>>, %arg2: memref<8x256xf32, #tpu.memory_space<vmem>>, %arg3: memref<8x1xf32, #tpu.memory_space<vmem>>) attributes {dimension_semantics = [#tpu.dimension_semantics<parallel>], iteration_bounds = array<i64: 1>, scalar_prefetch = 0 : i64, scratch_operands = 0 : i64, tpu.core_type = #tpu.core_type<tc>, window_params = [{transform_indices = @transform_0, window_bounds = array<i64: 8, 256>}, {transform_indices = @transform_1, window_bounds = array<i64: 8, 256>}, {transform_indices = @transform_2, window_bounds = array<i64: 8, 1>}]} {
    %c0 = arith.constant 0 : index
    %c0_0 = arith.constant 0 : index
    %0 = vector.load %arg1[%c0, %c0_0] : memref<8x256xf32, #tpu.memory_space<vmem>>, vector<8x256xf32>
    %c0_1 = arith.constant 0 : index
    %c0_2 = arith.constant 0 : index
    %1 = vector.load %arg2[%c0_1, %c0_2] : memref<8x256xf32, #tpu.memory_space<vmem>>, vector<8x256xf32>
    %2 = arith.mulf %0, %1 : vector<8x256xf32>
    %cst = arith.constant dense<0.000000e+00> : vector<8xf32>
    %3 = vector.multi_reduction <add>, %2, %cst [1] : vector<8x256xf32> to vector<8xf32>
    %4 = vector.shape_cast %3 : vector<8xf32> to vector<8x1xf32>
    %5 = arith.mulf %0, %0 : vector<8x256xf32>
    %cst_3 = arith.constant dense<0.000000e+00> : vector<8xf32>
    %6 = vector.multi_reduction <add>, %5, %cst_3 [1] : vector<8x256xf32> to vector<8xf32>
    %7 = vector.shape_cast %6 : vector<8xf32> to vector<8x1xf32>
    %8 = arith.mulf %1, %1 : vector<8x256xf32>
    %cst_4 = arith.constant dense<0.000000e+00> : vector<8xf32>
    %9 = vector.multi_reduction <add>, %8, %cst_4 [1] : vector<8x256xf32> to vector<8xf32>
    %10 = vector.shape_cast %9 : vector<8xf32> to vector<8x1xf32>
    %cst_5 = arith.constant 1.000000e-18 : f32
    %11 = vector.broadcast %cst_5 : f32 to vector<8x1xf32>
    %12 = arith.maximumf %7, %11 : vector<8x1xf32>
    %cst_6 = arith.constant 1.000000e-18 : f32
    %13 = vector.broadcast %cst_6 : f32 to vector<8x1xf32>
    %14 = arith.maximumf %10, %13 : vector<8x1xf32>
    %15 = arith.mulf %12, %14 : vector<8x1xf32>
    %16 = math.rsqrt %15 : vector<8x1xf32>
    %17 = arith.mulf %4, %16 : vector<8x1xf32>
    %c0_7 = arith.constant 0 : index
    %c0_8 = arith.constant 0 : index
    %18 = vector.load %arg3[%c0_7, %c0_8] : memref<8x1xf32, #tpu.memory_space<vmem>>, vector<8x1xf32>
    tpu.vector_store %arg3[%c0_7, %c0_8], %17 {strides = array<i32>} : memref<8x1xf32, #tpu.memory_space<vmem>>, vector<8x1xf32>,
    return
  }
  func.func @transform_0(%arg0: i32) -> (i32, i32) {
    %c0_i32 = arith.constant 0 : i32
    %c0_i32_0 = arith.constant 0 : i32
    return %arg0, %c0_i32 : i32, i32
  }
  func.func @transform_1(%arg0: i32) -> (i32, i32) {
    %c0_i32 = arith.constant 0 : i32
    %c0_i32_0 = arith.constant 0 : i32
    return %arg0, %c0_i32 : i32, i32
  }
  func.func @transform_2(%arg0: i32) -> (i32, i32) {
    %c0_i32 = arith.constant 0 : i32
    %c0_i32_0 = arith.constant 0 : i32
    return %arg0, %c0_i32 : i32, i32
  }
}

</mosaic_0001>

<llo_original>
// kernel: tpu_custom_call.1
$region0: #{tpu_custom_call.1}
  #allocation0 [shape = 'u32[]', space=smem, size = 0x4, offset = 0x4, fixed_abs, tag = 'smem constant byte address 0x4 - core index']
  #allocation1 [shape = 'u32[144,128]{1,0:T(1,128)}', space=vmem, size = 0x12000, scoped, tag = 'internal scratch']
  %s0 = inlined_call_operand.hbm [shape: f32[8,256], index: 0, kind: input, shape index: {}]
  %s1 = inlined_call_operand.hbm [shape: f32[8,256], index: 1, kind: input, shape index: {}]
  %s2 = inlined_call_operand.vmem [shape: f32[8,1], index: 2, kind: output, shape index: {}]
  %s3 = sld [smem:[#allocation0]]
  $region26: #{tpu_custom_call.1} parent=0
    _
  %s5 = ssub.s32 1, %s3
  %s6 = scalar_select 0, %s5, %s3
  $region1: #{tpu_custom_call.1} parent=0
    #allocation2 [shape = 'u8[8192]{0}', space=vmem, size = 0x2000, scoped, tag = 'input window, operand 0, single buffered']
    #allocation3 [shape = 's32[1]{0}', space=sflag, size = 0x4, scoped, tag = 'scoped memory for tpu_custom_call.1']
    #allocation4 [shape = 'u8[8192]{0}', space=vmem, size = 0x2000, scoped, tag = 'input window, operand 1, single buffered']
    #allocation5 [shape = 's32[1]{0}', space=sflag, size = 0x4, scoped, tag = 'scoped memory for tpu_custom_call.1']
    %7 = vsyncpa [#allocation3], 0
    %8 = vsyncpa [#allocation5], 0
    // Predicated region
    $region2: #{tpu_custom_call.1} parent=1 // pred_check
      _
    $region3: #{tpu_custom_call.1} parent=1 // pred_check_branch
      %10 = sbr.rel (0) target = $region5
    $region4: #{tpu_custom_call.1} parent=1 // pred_region
      %s12 = ssub.s32 256, 256
      %13 = vsyncadd [#allocation3], %s12
      %s15 = sshll.u32 [#allocation2], 4
      %s16 = int_to_ptr.vmem [resolvable:$true] %s15
      %18 = dma.hbm_to_vmem [thread:$0]  %s0, 256, %s16, [#allocation3]
    $region5: #{tpu_custom_call.1} parent=1 // pred_fallthru
      _
    // Predicated region
    $region6: #{tpu_custom_call.1} parent=1 // pred_check
      _
    $region7: #{tpu_custom_call.1} parent=1 // pred_check_branch
      %20 = sbr.rel (0) target = $region9
    $region8: #{tpu_custom_call.1} parent=1 // pred_region
      %s22 = ssub.s32 256, 256
      %23 = vsyncadd [#allocation5], %s22
      %s25 = sshll.u32 [#allocation4], 4
      %s26 = int_to_ptr.vmem [resolvable:$true] %s25
      %28 = dma.hbm_to_vmem [thread:$0]  %s1, 256, %s26, [#allocation5]
    $region9: #{tpu_custom_call.1} parent=1 // pred_fallthru
      _
    // Predicated region
    $region10: #{tpu_custom_call.1} parent=1 // pred_check
      _
    $region11: #{tpu_custom_call.1} parent=1 // pred_check_branch
      %30 = sbr.rel (0) target = $region13
    $region12: #{tpu_custom_call.1} parent=1 // pred_region
      %31 = dma.done [#allocation3], 256
    $region13: #{tpu_custom_call.1} parent=1 // pred_fallthru
      _
    // Predicated region
    $region14: #{tpu_custom_call.1} parent=1 // pred_check
      _
    $region15: #{tpu_custom_call.1} parent=1 // pred_check_branch
      %33 = sbr.rel (0) target = $region17
    $region16: #{tpu_custom_call.1} parent=1 // pred_region
      %34 = dma.done [#allocation5], 256
    $region17: #{tpu_custom_call.1} parent=1 // pred_fallthru
      _
    %v35 = vld [vmem:[#allocation2] sm:$0xff]
    %v36 = vld [vmem:[#allocation2 + $0x8] sm:$0xff]
    %v37 = vld [vmem:[#allocation4] sm:$0xff]
    %v38 = vld [vmem:[#allocation4 + $0x8] sm:$0xff]
    %v39 = vmul.f32 %v35, %v37
    %v40 = vmul.f32 %v36, %v38
    %v41 = vadd.f32 %v39, %v40
    %42 = vadd.xlane.f32.xlu0 %v41
    %v43 = vpop.xlane.xlu0 %42
    %v44 = vmul.f32 %v35, %v35
    %v45 = vmul.f32 %v36, %v36
    %v46 = vadd.f32 %v44, %v45
    %47 = vadd.xlane.f32.xlu0 %v46
    %v48 = vpop.xlane.xlu0 %47
    %v49 = vmul.f32 %v37, %v37
    %v50 = vmul.f32 %v38, %v38
    %v51 = vadd.f32 %v49, %v50
    %52 = vadd.xlane.f32.xlu0 %v51
    %v53 = vpop.xlane.xlu0 %52
    %v54 = vmax.f32 %v48, 1e-18
    %v55 = vmax.f32 %v53, 1e-18
    %v56 = vmul.f32 %v54, %v55
    %v57 = vrsqrt.pop %v56
    %v58 = vmul.f32 %v43, %v57
    %vm59 = vcmask 7168
    %60 = vst.msk [vmem:[%s2] sm:$0xff] %vm59, %v58
    // Predicated region
    $region18: #{tpu_custom_call.1} parent=1 // pred_check
      _
    $region19: #{tpu_custom_call.1} parent=1 // pred_check_branch
      %62 = sbr.rel (0) target = $region21
    $region20: #{tpu_custom_call.1} parent=1 // pred_region
      _
    $region21: #{tpu_custom_call.1} parent=1 // pred_fallthru
      _
    // Predicated region
    $region22: #{tpu_custom_call.1} parent=1 // pred_check
      _
    $region23: #{tpu_custom_call.1} parent=1 // pred_check_branch
      %64 = sbr.rel (0) target = $region25
    $region24: #{tpu_custom_call.1} parent=1 // pred_region
      _
    $region25: #{tpu_custom_call.1} parent=1 // pred_fallthru
      _
    %65 = vsyncpa [#allocation3], 1
    %66 = vsyncpa [#allocation5], 1

</llo_original>
